<compile_context>
chip_gen: v5e
topology: v5e:2x2
jax: 0.10.0
libtpu: 0.0.40
codegen_flags: <defaults>
</compile_context>

<pallas_src>
import math
from functools import partial

import jax
import jax.numpy as jnp
from jax.experimental import pallas as pl
from jax.experimental.pallas import tpu as pltpu

_LANE = 128
_SUBLANE = 8


def _round_up(v, m):
    return ((v + m - 1) // m) * m


def _has_bf16_vector_units():
    """True on v6e/v7x (bf16 VPU + EUP); False on v5e and older (compute in f32)."""
    try:
        kind = jax.devices()[0].device_kind.lower()
    except Exception:
        return False
    return not any(tag in kind for tag in ("v2", "v3", "v4", "v5"))


def _compute_dtype(x_dtype):
    if x_dtype == jnp.float32:
        return jnp.float32
    # Narrow float input (bf16/fp16): native narrow compute where the VPU/EUP support
    # it, otherwise upcast to f32.
    return x_dtype if _has_bf16_vector_units() else jnp.float32


def _gelu_kernel(x_ref, o_ref, *, compute_dtype):
    x = x_ref[...].astype(compute_dtype)
    c = math.sqrt(2.0 / math.pi)  # weak-typed python scalars keep the compute dtype
    # c * (x + 0.044715 * x^3) == c * x * (1 + 0.044715 * x^2)  (one fewer multiply)
    inner = c * x * (1.0 + 0.044715 * (x * x))
    y = 0.5 * x * (1.0 + jnp.tanh(inner))  # tanh -> EUP slot, free while HBM-bound
    o_ref[...] = y.astype(o_ref.dtype)


def _choose_layout(n, max_cols):
    """Pick (rows, cols) with rows*cols == n (no padding) and cols a multiple of 128.

    Prefer rows being a multiple of 8 (full (8,128) vreg tiles); among those take the
    widest cols.  Callers guarantee n % 128 == 0, so a layout always exists (c=128).
    """
    best = None
    limit = min(n, max_cols)
    for c in range(_LANE, limit + 1, _LANE):
        if n % c == 0 and (n // c) % _SUBLANE == 0:
            best = (n // c, c)
    if best is not None:
        return best
    for c in range(_LANE, limit + 1, _LANE):
        if n % c == 0:
            best = (n // c, c)
    return best


def _run_kernel_flat(x_flat, target_block_bytes, max_cols, vmem_limit_bytes):
    """Run the GELU kernel on a flat array whose length is a multiple of 128."""
    n = x_flat.shape[0]
    itemsize = x_flat.dtype.itemsize
    rows, cols = _choose_layout(n, max_cols)
    x2 = x_flat.reshape(rows, cols)  # pure reshape: no pad, no extra HBM traffic

    total_bytes = rows * cols * itemsize
    if rows <= _SUBLANE:
        row_tile = rows  # tiny: single full-dim block (always a legal block shape)
    else:
        # Multiple-of-8 row tile sized for ~target_block_bytes.  It does NOT need to
        # divide `rows` evenly -- the ragged last block is handled by cdiv below.
        rt = max(_SUBLANE,
                 (target_block_bytes // (cols * itemsize)) // _SUBLANE * _SUBLANE)
        if total_bytes > target_block_bytes:
            # v7x megacore: keep >= 2 grid steps (and prefer an even count) so the
            # "parallel" axis shards evenly across both TensorCores.
            steps = max(2, pl.cdiv(rows, rt))
            if steps % 2:
                steps += 1
            rt = min(rt, _round_up(pl.cdiv(rows, steps), _SUBLANE))
        row_tile = min(rows, rt)

    grid = (pl.cdiv(rows, row_tile),)
    kernel = partial(_gelu_kernel, compute_dtype=_compute_dtype(x_flat.dtype))

    out = pl.pallas_call(
        kernel,
        out_shape=jax.ShapeDtypeStruct((rows, cols), x_flat.dtype),
        grid=grid,
        in_specs=[pl.BlockSpec((row_tile, cols), lambda i: (i, 0))],
        out_specs=pl.BlockSpec((row_tile, cols), lambda i: (i, 0)),
        compiler_params=pltpu.CompilerParams(
            dimension_semantics=("parallel",),  # shard grid steps across v7x's 2 TCs
            vmem_limit_bytes=vmem_limit_bytes,
        ),
        cost_estimate=pl.CostEstimate(
            flops=8 * n,
            transcendentals=n,
            bytes_accessed=2 * n * itemsize,
        ),
    )(x2)
    return out.reshape(n)


def gelu_pallas(x, *, target_block_bytes=8 * 1024 * 1024, max_cols=4096,
                vmem_limit_bytes=48 * 1024 * 1024):
    """Tanh-approximation GELU. x: any shape. Returns same shape/dtype."""
    orig_shape = x.shape
    n = math.prod(orig_shape) if x.ndim > 0 else 1
    if x.ndim == 0 or n == 0:
        return gelu_ref(x)  # trivial scalar / empty; not worth a kernel launch

    x_flat = x.reshape(n)

    if n % _LANE == 0:
        return _run_kernel_flat(
            x_flat, target_block_bytes, max_cols, vmem_limit_bytes).reshape(orig_shape)

    # Ragged total size: run the bulk (multiple of 8*128 elements) through the
    # lane-dense kernel; compute the tiny tail (< 1024 elements) with plain jnp.
    # This avoids a lane-sparse output layout (masked partial stores).
    n_bulk = (n // (_SUBLANE * _LANE)) * (_SUBLANE * _LANE)
    if n_bulk == 0:
        return gelu_ref(x)  # tiny tensor; plain jnp
    y_bulk = _run_kernel_flat(
        x_flat[:n_bulk], target_block_bytes, max_cols, vmem_limit_bytes)
    y_tail = gelu_ref(x_flat[n_bulk:])
    return jnp.concatenate([y_bulk, y_tail]).reshape(orig_shape)


def gelu_ref(x):
    c = jnp.sqrt(jnp.asarray(2.0 / jnp.pi, dtype=jnp.float32)).astype(x.dtype)
    return 0.5 * x * (1.0 + jnp.tanh(c * (x + 0.044715 * jnp.power(x, 3))))


if __name__ == "__main__":
    key = jax.random.PRNGKey(0)
    k1, k2 = jax.random.split(key)

    # Matches the module's example input: torch.rand(2, 4, 768) -> uniform [0, 1)
    x = jax.random.uniform(k1, (2, 4, 768), dtype=jnp.float32)
    y = jax.block_until_ready(gelu_pallas(x))
    y_ref = gelu_ref(x)
    assert y.shape == x.shape and y.dtype == x.dtype
    assert jnp.allclose(y, y_ref, atol=1e-5, rtol=1e-5), "mismatch vs reference"

    # Ragged total size (n % 128 != 0): exercises the bulk-kernel + jnp-tail path.
    xr = jax.random.uniform(k2, (17, 300), dtype=jnp.float32)
    yr = jax.block_until_ready(gelu_pallas(xr))
    assert yr.shape == xr.shape and yr.dtype == xr.dtype
    assert jnp.allclose(yr, gelu_ref(xr), atol=1e-5, rtol=1e-5), "ragged mismatch"

    print("KERNEL_OK")
</pallas_src>

<mosaic_0001>
module attributes {stable_mosaic.version = 11 : i64} {
  func.func @_gelu_kernel(%arg0: i32, %arg1: memref<8x768xf32, #tpu.memory_space<vmem>>, %arg2: memref<8x768xf32, #tpu.memory_space<vmem>>) attributes {dimension_semantics = [#tpu.dimension_semantics<parallel>], iteration_bounds = array<i64: 1>, scalar_prefetch = 0 : i64, scratch_operands = 0 : i64, tpu.core_type = #tpu.core_type<tc>, window_params = [{transform_indices = @transform_0, window_bounds = array<i64: 8, 768>}, {transform_indices = @transform_1, window_bounds = array<i64: 8, 768>}]} {
    %c0 = arith.constant 0 : index
    %c0_0 = arith.constant 0 : index
    %0 = vector.load %arg1[%c0, %c0_0] : memref<8x768xf32, #tpu.memory_space<vmem>>, vector<8x768xf32>
    %cst = arith.constant 0.797884583 : f32
    %1 = vector.broadcast %cst : f32 to vector<8x768xf32>
    %2 = arith.mulf %1, %0 : vector<8x768xf32>
    %3 = arith.mulf %0, %0 : vector<8x768xf32>
    %cst_1 = arith.constant 4.471500e-02 : f32
    %4 = vector.broadcast %cst_1 : f32 to vector<8x768xf32>
    %5 = arith.mulf %4, %3 : vector<8x768xf32>
    %cst_2 = arith.constant 1.000000e+00 : f32
    %6 = vector.broadcast %cst_2 : f32 to vector<8x768xf32>
    %7 = arith.addf %6, %5 : vector<8x768xf32>
    %8 = arith.mulf %2, %7 : vector<8x768xf32>
    %cst_3 = arith.constant 5.000000e-01 : f32
    %9 = vector.broadcast %cst_3 : f32 to vector<8x768xf32>
    %10 = arith.mulf %9, %0 : vector<8x768xf32>
    %11 = math.tanh %8 : vector<8x768xf32>
    %cst_4 = arith.constant 1.000000e+00 : f32
    %12 = vector.broadcast %cst_4 : f32 to vector<8x768xf32>
    %13 = arith.addf %12, %11 : vector<8x768xf32>
    %14 = arith.mulf %10, %13 : vector<8x768xf32>
    %c0_5 = arith.constant 0 : index
    %c0_6 = arith.constant 0 : index
    %15 = vector.load %arg2[%c0_5, %c0_6] : memref<8x768xf32, #tpu.memory_space<vmem>>, vector<8x768xf32>
    tpu.vector_store %arg2[%c0_5, %c0_6], %14 {strides = array<i32>} : memref<8x768xf32, #tpu.memory_space<vmem>>, vector<8x768xf32>,
    return
  }
  func.func @transform_0(%arg0: i32) -> (i32, i32) {
    %c0_i32 = arith.constant 0 : i32
    %c0_i32_0 = arith.constant 0 : i32
    return %arg0, %c0_i32 : i32, i32
  }
  func.func @transform_1(%arg0: i32) -> (i32, i32) {
    %c0_i32 = arith.constant 0 : i32
    %c0_i32_0 = arith.constant 0 : i32
    return %arg0, %c0_i32 : i32, i32
  }
}

</mosaic_0001>

<llo_original>
// kernel: tpu_custom_call.1
$region0: #{tpu_custom_call.1}
  #allocation0 [shape = 'u32[]', space=smem, size = 0x4, offset = 0x4, fixed_abs, tag = 'smem constant byte address 0x4 - core index']
  #allocation1 [shape = 'u32[72,128]{1,0:T(1,128)}', space=vmem, size = 0x9000, scoped, tag = 'internal scratch']
  %s0 = inlined_call_operand.hbm [shape: f32[8,768], index: 0, kind: input, shape index: {}]
  %s1 = inlined_call_operand.hbm [shape: f32[8,768], index: 1, kind: output, shape index: {}]
  %s2 = sld [smem:[#allocation0]]
  $region18: #{tpu_custom_call.1} parent=0
    _
  %s4 = ssub.s32 1, %s2
  %s5 = scalar_select 0, %s4, %s2
  $region1: #{tpu_custom_call.1} parent=0
    #allocation2 [shape = 'u8[24576]{0}', space=vmem, size = 0x6000, scoped, tag = 'input window, operand 0, single buffered']
    #allocation3 [shape = 's32[1]{0}', space=sflag, size = 0x4, scoped, tag = 'scoped memory for tpu_custom_call.1']
    #allocation4 [shape = 's32[1]{0}', space=sflag, size = 0x4, scoped, tag = 'scoped memory for tpu_custom_call.1']
    #allocation5 [shape = 'u8[24576]{0}', space=vmem, size = 0x6000, scoped, tag = 'output window, operand 0, single buffered']
    %6 = vsyncpa [#allocation3], 0
    %7 = vsyncpa [#allocation4], 0
    // Predicated region
    $region2: #{tpu_custom_call.1} parent=1 // pred_check
      _
    $region3: #{tpu_custom_call.1} parent=1 // pred_check_branch
      %9 = sbr.rel (0) target = $region5
    $region4: #{tpu_custom_call.1} parent=1 // pred_region
      %11 = vsyncadd [#allocation3], 0
      %s13 = sshll.u32 %s0, 4
      %s14 = int_to_ptr.hbm [resolvable:$true] %s13
      %s15 = sshll.u32 [#allocation2], 4
      %s16 = int_to_ptr.vmem [resolvable:$true] %s15
      %18 = dma.hbm_to_vmem [thread:$0]  %s14, 768, %s16, [#allocation3]
    $region5: #{tpu_custom_call.1} parent=1 // pred_fallthru
      _
    // Predicated region
    $region6: #{tpu_custom_call.1} parent=1 // pred_check
      _
    $region7: #{tpu_custom_call.1} parent=1 // pred_check_branch
      %20 = sbr.rel (0) target = $region9
    $region8: #{tpu_custom_call.1} parent=1 // pred_region
      %22 = dma.done [#allocation3], 768
    $region9: #{tpu_custom_call.1} parent=1 // pred_fallthru
      _
    %v23 = vld [vmem:[#allocation2] sm:$0xff]
    %v24 = vld [vmem:[#allocation2 + $0x8] sm:$0xff]
    %v25 = vld [vmem:[#allocation2 + $0x10] sm:$0xff]
    %v26 = vld [vmem:[#allocation2 + $0x18] sm:$0xff]
    %v27 = vld [vmem:[#allocation2 + $0x20] sm:$0xff]
    %v28 = vld [vmem:[#allocation2 + $0x28] sm:$0xff]
    %v29 = vmul.f32 %v23, 0.7978846
    %v30 = vmul.f32 %v24, 0.7978846
    %v31 = vmul.f32 %v25, 0.7978846
    %v32 = vmul.f32 %v26, 0.7978846
    %v33 = vmul.f32 %v27, 0.7978846
    %v34 = vmul.f32 %v28, 0.7978846
    %v35 = vmul.f32 %v23, %v23
    %v36 = vmul.f32 %v24, %v24
    %v37 = vmul.f32 %v25, %v25
    %v38 = vmul.f32 %v26, %v26
    %v39 = vmul.f32 %v27, %v27
    %v40 = vmul.f32 %v28, %v28
    %v41 = vmul.f32 %v35, 0.044715
    %v42 = vmul.f32 %v36, 0.044715
    %v43 = vmul.f32 %v37, 0.044715
    %v44 = vmul.f32 %v38, 0.044715
    %v45 = vmul.f32 %v39, 0.044715
    %v46 = vmul.f32 %v40, 0.044715
    %v47 = vadd.f32 %v41, 1.0
    %v48 = vadd.f32 %v42, 1.0
    %v49 = vadd.f32 %v43, 1.0
    %v50 = vadd.f32 %v44, 1.0
    %v51 = vadd.f32 %v45, 1.0
    %v52 = vadd.f32 %v46, 1.0
    %v53 = vmul.f32 %v29, %v47
    %v54 = vmul.f32 %v30, %v48
    %v55 = vmul.f32 %v31, %v49
    %v56 = vmul.f32 %v32, %v50
    %v57 = vmul.f32 %v33, %v51
    %v58 = vmul.f32 %v34, %v52
    %v59 = vmul.f32 %v23, 0.5
    %v60 = vmul.f32 %v24, 0.5
    %v61 = vmul.f32 %v25, 0.5
    %v62 = vmul.f32 %v26, 0.5
    %v63 = vmul.f32 %v27, 0.5
    %v64 = vmul.f32 %v28, 0.5
    %v65 = vtanh.pop %v53
    %v66 = vtanh.pop %v54
    %v67 = vtanh.pop %v55
    %v68 = vtanh.pop %v56
    %v69 = vtanh.pop %v57
    %v70 = vtanh.pop %v58
    %v71 = vadd.f32 %v65, 1.0
    %v72 = vadd.f32 %v66, 1.0
    %v73 = vadd.f32 %v67, 1.0
    %v74 = vadd.f32 %v68, 1.0
    %v75 = vadd.f32 %v69, 1.0
    %v76 = vadd.f32 %v70, 1.0
    %v77 = vmul.f32 %v59, %v71
    %v78 = vmul.f32 %v60, %v72
    %v79 = vmul.f32 %v61, %v73
    %v80 = vmul.f32 %v62, %v74
    %v81 = vmul.f32 %v63, %v75
    %v82 = vmul.f32 %v64, %v76
    %83 = vst [vmem:[#allocation5] sm:$0xff] %v77
    %84 = vst [vmem:[#allocation5 + $0x8] sm:$0xff] %v78
    %85 = vst [vmem:[#allocation5 + $0x10] sm:$0xff] %v79
    %86 = vst [vmem:[#allocation5 + $0x18] sm:$0xff] %v80
    %87 = vst [vmem:[#allocation5 + $0x20] sm:$0xff] %v81
    %88 = vst [vmem:[#allocation5 + $0x28] sm:$0xff] %v82
    // Predicated region
    $region10: #{tpu_custom_call.1} parent=1 // pred_check
      _
    $region11: #{tpu_custom_call.1} parent=1 // pred_check_branch
      %90 = sbr.rel (0) target = $region13
    $region12: #{tpu_custom_call.1} parent=1 // pred_region
      %92 = vsyncadd [#allocation4], 0
      %s94 = sshll.u32 [#allocation5], 4
      %s95 = int_to_ptr.vmem [resolvable:$true] %s94
      %s96 = sshll.u32 %s1, 4
      %s97 = int_to_ptr.hbm [resolvable:$true] %s96
      %99 = dma.vmem_to_hbm [thread:$0]  %s95, 768, %s97, [#allocation4]
    $region13: #{tpu_custom_call.1} parent=1 // pred_fallthru
      _
    // Predicated region
    $region14: #{tpu_custom_call.1} parent=1 // pred_check
      _
    $region15: #{tpu_custom_call.1} parent=1 // pred_check_branch
      %101 = sbr.rel (0) target = $region17
    $region16: #{tpu_custom_call.1} parent=1 // pred_region
      %103 = dma.done [#allocation4], 768
    $region17: #{tpu_custom_call.1} parent=1 // pred_fallthru
      _
    %104 = vsyncpa [#allocation3], 1
    %105 = vsyncpa [#allocation4], 1

</llo_original>
